<compile_context>
chip_gen: v7x
topology: tpu7x:2x2x1
jax: 0.10.0
libtpu: 0.0.40
codegen_flags: <defaults>
</compile_context>

<pallas_src>
import functools

import jax
import jax.numpy as jnp
from jax import lax
from jax.experimental import pallas as pl
from jax.experimental.pallas import tpu as pltpu

_LANE = 128
_SUBLANE = 8
_CHUNK_ROWS = 128   # rows of the (rows, 128) slab processed per inner-loop step


def _masked_ruber_kernel(pred_ref, tgt_ref, sum_ref, cnt_ref, *,
                         c, rows, tile_rows, chunk_rows, num_blocks,
                         need_row_mask):
    n_chunks = tile_rows // chunk_rows

    def run(masked_tail):
        if masked_tail:
            # Number of in-bounds rows of this (last, partial) block. Scalar.
            block_bound = rows - pl.program_id(0) * tile_rows

        def body(ci, carry):
            acc_s, acc_c = carry
            r0 = pl.multiple_of(ci * chunk_rows, chunk_rows)
            t = tgt_ref[pl.ds(r0, chunk_rows), :].astype(jnp.float32)
            p = pred_ref[pl.ds(r0, chunk_rows), :].astype(jnp.float32)
            if masked_tail:
                # Compare local iota vs a scalar bound (no full-tile add), and zero
                # OOB rows *before* the math so garbage/NaN never reaches the sums.
                row = lax.broadcasted_iota(jnp.int32, t.shape, 0)
                in_b = row < (block_bound - r0)
                t = jnp.where(in_b, t, 0.0)
                p = jnp.where(in_b, p, 0.0)
            valid = t > 0.0
            e = jnp.abs(t - p)
            # berHu: on selected lanes of the big branch e > c, so 2*c*e - c*c > 0 and
            # sqrt (EUP slot) is well defined; unselected-lane values are discarded by
            # the where (forward-only kernel, no clamp needed).
            d = jnp.where(e <= c, e, jnp.sqrt(2.0 * c * e - c * c))
            dm = jnp.where(valid, d, 0.0)           # NaN-in-target safe
            cm = valid.astype(jnp.float32)
            # (chunk, 128) -> (8, 128) partials: pure sublane-aligned VPU vreg adds.
            acc_s = acc_s + jnp.sum(dm.reshape(-1, _SUBLANE, _LANE), axis=0)
            acc_c = acc_c + jnp.sum(cm.reshape(-1, _SUBLANE, _LANE), axis=0)
            return acc_s, acc_c

        zero = jnp.zeros((_SUBLANE, _LANE), jnp.float32)
        acc_s, acc_c = lax.fori_loop(0, n_chunks, body, (zero, zero))
        sum_ref[0] = acc_s
        cnt_ref[0] = acc_c

    if need_row_mask:
        last = num_blocks - 1

        @pl.when(pl.program_id(0) != last)
        def _():
            run(masked_tail=False)          # steady state: no masking ops at all

        @pl.when(pl.program_id(0) == last)
        def _():
            run(masked_tail=True)           # ragged tail only
    else:
        run(masked_tail=False)


def _round_up(x, m):
    return ((x + m - 1) // m) * m


def masked_ruber_loss(pred, target, c=1.0, *, tile_rows=None):
    """Masked berHu ('Ruber') loss matching MaskedRuberLoss.forward. Scalar f32."""
    assert pred.shape == target.shape, "inconsistent dimensions"

    pred_f = pred.reshape(-1)
    tgt_f = target.reshape(-1)
    n = pred_f.shape[0]

    # Lane-align: pad at most 127 elements; padded targets are 0 -> masked out.
    rem = n % _LANE
    if rem:
        pad = _LANE - rem
        pred_f = jnp.pad(pred_f, (0, pad))
        tgt_f = jnp.pad(tgt_f, (0, pad))

    pred2 = pred_f.reshape(-1, _LANE)
    tgt2 = tgt_f.reshape(-1, _LANE)
    rows = pred2.shape[0]
    itemsize = jnp.dtype(pred2.dtype).itemsize

    # --- Tile sizing ------------------------------------------------------------
    # ~4 MiB input blocks (2 inputs x 2 pipeline buffers = 16 MiB) amortize the
    # ~0.35 us fixed per-grid-step overhead and fit v7x's 64 MiB/TC VMEM.
    if tile_rows is None:
        tile_rows = 8192 if itemsize >= 4 else 16384
    rows_up = _round_up(rows, _SUBLANE)
    tr = _round_up(min(int(tile_rows), rows_up), _SUBLANE)
    # v7x megacore: ensure >= 2 grid blocks whenever the input allows it.
    if rows_up >= 2 * _SUBLANE and pl.cdiv(rows, tr) < 2:
        tr = _round_up(pl.cdiv(rows, 2), _SUBLANE)
    chunk = min(_CHUNK_ROWS, tr)
    tr = max(chunk, (tr // chunk) * chunk)              # tr % chunk == 0
    num_blocks = pl.cdiv(rows, tr)
    need_row_mask = (rows % tr) != 0

    kernel = functools.partial(
        _masked_ruber_kernel,
        c=float(c), rows=rows, tile_rows=tr, chunk_rows=chunk,
        num_blocks=num_blocks, need_row_mask=need_row_mask)

    # --- VMEM budget ------------------------------------------------------------
    # Inputs: 2 arrays x 2 pipeline buffers x block (native dtype).
    # Working set: a handful of f32 (chunk, 128) temporaries (f32 upcast is per-chunk,
    # the full tile is never materialized in f32).  Outputs: 2 x 2 x (8,128) f32.
    vmem_needed = (2 * 2 * tr * _LANE * itemsize
                   + 8 * chunk * _LANE * 4
                   + 2 * 2 * _SUBLANE * _LANE * 4
                   + (2 << 20))                         # headroom
    # Cap at 40 MiB: safe on v7x (64 MiB physical per TC).
    vmem_limit = int(min(max(vmem_needed, 16 << 20), 40 << 20))

    out_sum, out_cnt = pl.pallas_call(
        kernel,
        out_shape=(
            jax.ShapeDtypeStruct((num_blocks, _SUBLANE, _LANE), jnp.float32),
            jax.ShapeDtypeStruct((num_blocks, _SUBLANE, _LANE), jnp.float32),
        ),
        grid_spec=pltpu.PrefetchScalarGridSpec(
            num_scalar_prefetch=0,
            grid=(num_blocks,),
            in_specs=[
                pl.BlockSpec((tr, _LANE), lambda i: (i, 0)),
                pl.BlockSpec((tr, _LANE), lambda i: (i, 0)),
            ],
            out_specs=[
                pl.BlockSpec((1, _SUBLANE, _LANE), lambda i: (i, 0, 0)),
                pl.BlockSpec((1, _SUBLANE, _LANE), lambda i: (i, 0, 0)),
            ],
        ),
        compiler_params=pltpu.CompilerParams(
            dimension_semantics=("parallel",),   # independent blocks -> megacore-shardable
            vmem_limit_bytes=vmem_limit,
        ),
    )(pred2, tgt2)

    # Tiny final reduction + divide in the wrapper (negligible HBM traffic).
    # NOTE: like the PyTorch original, this yields NaN if no element has target > 0.
    return jnp.sum(out_sum) / jnp.sum(out_cnt)


def _reference(pred, target, c=1.0):
    pred = pred.astype(jnp.float32)
    target = target.astype(jnp.float32)
    mask = target > 0.0
    e = jnp.abs(target - pred)
    d = jnp.sqrt(jnp.where(e <= c, e * e, 2.0 * c * e - c * c))
    return jnp.sum(jnp.where(mask, d, 0.0)) / jnp.sum(mask.astype(jnp.float32))


if __name__ == "__main__":
    key = jax.random.PRNGKey(0)
    k1, k2 = jax.random.split(key)
    # NCHW-shaped example inputs (batch=2, channels=4, spatial=16x16)
    pred = jax.random.normal(k1, (2, 4, 16, 16), dtype=jnp.float32)
    # target: mix of positive (valid) and non-positive (masked) values
    target = jax.random.normal(k2, (2, 4, 16, 16), dtype=jnp.float32) * 2.0

    loss = jax.block_until_ready(masked_ruber_loss(pred, target, c=1.0))
    ref = jax.block_until_ready(_reference(pred, target, c=1.0))
    assert jnp.allclose(loss, ref, rtol=1e-5, atol=1e-5), (loss, ref)
    print("KERNEL_OK")
</pallas_src>

<mosaic_0001>
module attributes {stable_mosaic.version = 11 : i64} {
  func.func @_masked_ruber_kernel(%arg0: i32, %arg1: memref<8x128xf32, #tpu.memory_space<vmem>>, %arg2: memref<8x128xf32, #tpu.memory_space<vmem>>, %arg3: memref<1x8x128xf32, #tpu.memory_space<vmem>>, %arg4: memref<1x8x128xf32, #tpu.memory_space<vmem>>) attributes {dimension_semantics = [#tpu.dimension_semantics<parallel>], iteration_bounds = array<i64: 2>, scalar_prefetch = 0 : i64, scratch_operands = 0 : i64, tpu.core_type = #tpu.core_type<tc>, window_params = [{transform_indices = @transform_0, window_bounds = array<i64: 8, 128>}, {transform_indices = @transform_1, window_bounds = array<i64: 8, 128>}, {transform_indices = @transform_2, window_bounds = array<i64: 1, 8, 128>}, {transform_indices = @transform_3, window_bounds = array<i64: 1, 8, 128>}]} {
    %cst = arith.constant 0.000000e+00 : f32
    %0 = vector.broadcast %cst : f32 to vector<8x128xf32>
    %c0_i32 = arith.constant 0 : i32
    %c8_i32 = arith.constant 8 : i32
    %1 = arith.muli %c0_i32, %c8_i32 : i32
    %2 = tpu.assume_multiple %1, 8 : i32
    %3 = arith.index_cast %2 : i32 to index
    %c0 = arith.constant 0 : index
    %4 = vector.load %arg2[%3, %c0] : memref<8x128xf32, #tpu.memory_space<vmem>>, vector<8x128xf32>
    %5 = arith.index_cast %2 : i32 to index
    %c0_0 = arith.constant 0 : index
    %6 = vector.load %arg1[%5, %c0_0] : memref<8x128xf32, #tpu.memory_space<vmem>>, vector<8x128xf32>
    %cst_1 = arith.constant 0.000000e+00 : f32
    %7 = vector.broadcast %cst_1 : f32 to vector<8x128xf32>
    %8 = arith.cmpf ogt, %4, %7 : vector<8x128xf32>
    %9 = arith.subf %4, %6 : vector<8x128xf32>
    %10 = math.absf %9 : vector<8x128xf32>
    %cst_2 = arith.constant 1.000000e+00 : f32
    %11 = vector.broadcast %cst_2 : f32 to vector<8x128xf32>
    %12 = arith.cmpf ole, %10, %11 : vector<8x128xf32>
    %cst_3 = arith.constant 2.000000e+00 : f32
    %13 = vector.broadcast %cst_3 : f32 to vector<8x128xf32>
    %14 = arith.mulf %13, %10 : vector<8x128xf32>
    %cst_4 = arith.constant 1.000000e+00 : f32
    %15 = vector.broadcast %cst_4 : f32 to vector<8x128xf32>
    %16 = arith.subf %14, %15 : vector<8x128xf32>
    %17 = math.sqrt %16 : vector<8x128xf32>
    %18 = arith.select %12, %10, %17 : vector<8x128xi1>, vector<8x128xf32>
    %cst_5 = arith.constant 0.000000e+00 : f32
    %19 = vector.broadcast %cst_5 : f32 to vector<8x128xf32>
    %20 = arith.select %8, %18, %19 : vector<8x128xi1>, vector<8x128xf32>
    %21 = arith.extui %8 : vector<8x128xi1> to vector<8x128xi32>
    %22 = arith.sitofp %21 : vector<8x128xi32> to vector<8x128xf32>
    %23 = vector.shape_cast %20 : vector<8x128xf32> to vector<1x8x128xf32>
    %cst_6 = arith.constant dense<0.000000e+00> : vector<8x128xf32>
    %24 = vector.multi_reduction <add>, %23, %cst_6 [0] : vector<1x8x128xf32> to vector<8x128xf32>
    %25 = arith.addf %0, %24 : vector<8x128xf32>
    %26 = vector.shape_cast %22 : vector<8x128xf32> to vector<1x8x128xf32>
    %cst_7 = arith.constant dense<0.000000e+00> : vector<8x128xf32>
    %27 = vector.multi_reduction <add>, %26, %cst_7 [0] : vector<1x8x128xf32> to vector<8x128xf32>
    %28 = arith.addf %0, %27 : vector<8x128xf32>
    %c1_i32 = arith.constant 1 : i32
    %c0_8 = arith.constant 0 : index
    %c0_9 = arith.constant 0 : index
    %c0_10 = arith.constant 0 : index
    %29 = vector.load %arg3[%c0_8, %c0_9, %c0_10] : memref<1x8x128xf32, #tpu.memory_space<vmem>>, vector<1x8x128xf32>
    %30 = vector.shape_cast %29 : vector<1x8x128xf32> to vector<8x128xf32>
    %31 = vector.shape_cast %25 : vector<8x128xf32> to vector<1x8x128xf32>
    tpu.vector_store %arg3[%c0_8, %c0_9, %c0_10], %31 {strides = array<i32>} : memref<1x8x128xf32, #tpu.memory_space<vmem>>, vector<1x8x128xf32>,
    %c0_11 = arith.constant 0 : index
    %c0_12 = arith.constant 0 : index
    %c0_13 = arith.constant 0 : index
    %32 = vector.load %arg4[%c0_11, %c0_12, %c0_13] : memref<1x8x128xf32, #tpu.memory_space<vmem>>, vector<1x8x128xf32>
    %33 = vector.shape_cast %32 : vector<1x8x128xf32> to vector<8x128xf32>
    %34 = vector.shape_cast %28 : vector<8x128xf32> to vector<1x8x128xf32>
    tpu.vector_store %arg4[%c0_11, %c0_12, %c0_13], %34 {strides = array<i32>} : memref<1x8x128xf32, #tpu.memory_space<vmem>>, vector<1x8x128xf32>,
    return
  }
  func.func @transform_0(%arg0: i32) -> (i32, i32) {
    %c0_i32 = arith.constant 0 : i32
    %c0_i32_0 = arith.constant 0 : i32
    return %arg0, %c0_i32 : i32, i32
  }
  func.func @transform_1(%arg0: i32) -> (i32, i32) {
    %c0_i32 = arith.constant 0 : i32
    %c0_i32_0 = arith.constant 0 : i32
    return %arg0, %c0_i32 : i32, i32
  }
  func.func @transform_2(%arg0: i32) -> (i32, i32, i32) {
    %c0_i32 = arith.constant 0 : i32
    %c0_i32_0 = arith.constant 0 : i32
    %c0_i32_1 = arith.constant 0 : i32
    return %arg0, %c0_i32, %c0_i32_0 : i32, i32, i32
  }
  func.func @transform_3(%arg0: i32) -> (i32, i32, i32) {
    %c0_i32 = arith.constant 0 : i32
    %c0_i32_0 = arith.constant 0 : i32
    %c0_i32_1 = arith.constant 0 : i32
    return %arg0, %c0_i32, %c0_i32_0 : i32, i32, i32
  }
}

</mosaic_0001>

<llo_original>
// kernel: tpu_custom_call.1
$region0: #{tpu_custom_call.1}
  #allocation0 [shape = 'u32[]', space=smem, size = 0x4, offset = 0x4, fixed_abs, tag = 'smem constant byte address 0x4 - core index']
  #allocation1 [shape = 'u32[144,128]{1,0:T(1,128)}', space=vmem, size = 0x12000, scoped, tag = 'internal scratch']
  %s0 = inlined_call_operand.hbm [shape: f32[16,128], index: 0, kind: input, shape index: {}]
  %s1 = inlined_call_operand.hbm [shape: f32[16,128], index: 1, kind: input, shape index: {}]
  %s2 = inlined_call_operand.hbm [shape: f32[2,8,128], index: 2, kind: output, shape index: {0}]
  %s3 = inlined_call_operand.hbm [shape: f32[2,8,128], index: 3, kind: output, shape index: {1}]
  %4 = xla_tuple %s2, %s3
  %s5 = sld [smem:[#allocation0]]
  $region57: #{tpu_custom_call.1} parent=0
    _
  %s7 = ssub.s32 1, %s5
  %s8 = scalar_select 0, %s7, %s5
  $region1: #{tpu_custom_call.1} parent=0
    #allocation2 [shape = 'u8[8192]{0}', space=vmem, size = 0x2000, scoped, tag = 'input window, operand 0']
    #allocation3 [shape = 's32[2]{0}', space=sflag, size = 0x8, scoped, tag = 'scoped memory for tpu_custom_call.1']
    #allocation4 [shape = 's32[2]{0}', space=sflag, size = 0x8, scoped, tag = 'scoped memory for tpu_custom_call.1']
    #allocation5 [shape = 'u8[8192]{0}', space=vmem, size = 0x2000, scoped, tag = 'input window, operand 1']
    #allocation6 [shape = 's32[2]{0}', space=sflag, size = 0x8, scoped, tag = 'scoped memory for tpu_custom_call.1']
    #allocation7 [shape = 'u8[8192]{0}', space=vmem, size = 0x2000, scoped, tag = 'output window, operand 0']
    #allocation8 [shape = 'u8[8192]{0}', space=vmem, size = 0x2000, scoped, tag = 'output window, operand 1']
    #allocation9 [shape = 's32[2]{0}', space=sflag, size = 0x8, scoped, tag = 'scoped memory for tpu_custom_call.1']
    %9 = vsyncpa [#allocation3], 0
    %s10 = scalar_lea.sflag [#allocation3], 1
    %11 = vsyncpa %s10, 0
    %12 = vsyncpa [#allocation6], 0
    %s13 = scalar_lea.sflag [#allocation6], 1
    %14 = vsyncpa %s13, 0
    %15 = vsyncpa [#allocation4], 0
    %s16 = scalar_lea.sflag [#allocation4], 1
    %17 = vsyncpa %s16, 0
    %18 = vsyncpa [#allocation9], 0
    %s19 = scalar_lea.sflag [#allocation9], 1
    %20 = vsyncpa %s19, 0
    loop: start=0, step=1, limit=4
    $region2: #{tpu_custom_call.1} parent=1 // loop_pre_header
      _
    $region3: #{tpu_custom_call.1} parent=1 // loop_header
      %s22 = sphi 0, %s26
      %p23 = scmp.ge.s32.totalorder %s22, 4
      %s32 = sphi 0, %s34
      %s35 = sphi 0, %s32
      %s36 = sphi 0, %s35
      %s52 = sphi 0, %s36
      %s58 = sphi 0, %s60
      %s61 = sphi 0, %s58
      %s62 = sphi 0, %s61
      %s78 = sphi 0, %s62
      %s84 = sphi 0, %s86
      %s87 = sphi 0, %s84
      %s88 = sphi 0, %s87
      %s104 = sphi 0, %s88
      %s110 = sphi 0, %s112
      %s113 = sphi 0, %s110
      %s114 = sphi 0, %s113
      %s130 = sphi 0, %s114
    $region4: #{tpu_custom_call.1} parent=1 // loop_header_branch
      %25 = sbr.rel (%p23) target = $region8
    $region5: #{tpu_custom_call.1} parent=1 // loop_body
      %s27 = ssub.s32 %s22, 1
      %s28 = ssub.s32 %s22, 2
      %s29 = sadd.s32 %s22, 1
      %s30 = ssub.s32 %s22, %s29
      %p31 = scmp.eq.s32.totalorder %s30, 0
      %s33 = sadd.s32 %s32, 1
      %s34 = scalar_select %p31, %s32, %s33
      %p37 = pneg %p31
      %p38 = scmp.eq.s32.totalorder %s22, 1
      %p39 = por %p37, %p38
      %p40 = scmp.ne.s32.totalorder %s32, %s35
      %p41 = scmp.eq.s32.totalorder %s22, 0
      %p42 = por %p40, %p41
      %p43 = scmp.ne.s32.totalorder %s32, %s35
      %p44 = scmp.eq.s32.totalorder %s27, 1
      %p45 = por %p43, %p44
      %p46 = scmp.ne.s32.totalorder %s35, %s36
      %p47 = scmp.eq.s32.totalorder %s27, 0
      %p48 = por %p46, %p47
      %p49 = scmp.ne.s32.totalorder %s35, %s36
      %p50 = scmp.eq.s32.totalorder %s28, 1
      %p51 = por %p49, %p50
      %p53 = scmp.ne.s32.totalorder %s36, %s52
      %p54 = scmp.eq.s32.totalorder %s28, 0
      %p55 = por %p53, %p54
      %s56 = ssub.s32 %s22, %s29
      %p57 = scmp.eq.s32.totalorder %s56, 0
      %s59 = sadd.s32 %s58, 1
      %s60 = scalar_select %p57, %s58, %s59
      %p63 = pneg %p57
      %p64 = scmp.eq.s32.totalorder %s22, 1
      %p65 = por %p63, %p64
      %p66 = scmp.ne.s32.totalorder %s58, %s61
      %p67 = scmp.eq.s32.totalorder %s22, 0
      %p68 = por %p66, %p67
      %p69 = scmp.ne.s32.totalorder %s58, %s61
      %p70 = scmp.eq.s32.totalorder %s27, 1
      %p71 = por %p69, %p70
      %p72 = scmp.ne.s32.totalorder %s61, %s62
      %p73 = scmp.eq.s32.totalorder %s27, 0
      %p74 = por %p72, %p73
      %p75 = scmp.ne.s32.totalorder %s61, %s62
      %p76 = scmp.eq.s32.totalorder %s28, 1
      %p77 = por %p75, %p76
      %p79 = scmp.ne.s32.totalorder %s62, %s78
      %p80 = scmp.eq.s32.totalorder %s28, 0
      %p81 = por %p79, %p80
      %s82 = ssub.s32 %s22, %s29
      %p83 = scmp.eq.s32.totalorder %s82, 0
      %s85 = sadd.s32 %s84, 1
      %s86 = scalar_select %p83, %s84, %s85
      %p89 = pneg %p83
      %p90 = scmp.eq.s32.totalorder %s22, 1
      %p91 = por %p89, %p90
      %p92 = scmp.ne.s32.totalorder %s84, %s87
      %p93 = scmp.eq.s32.totalorder %s22, 0
      %p94 = por %p92, %p93
      %p95 = scmp.ne.s32.totalorder %s84, %s87
      %p96 = scmp.eq.s32.totalorder %s27, 1
      %p97 = por %p95, %p96
      %p98 = scmp.ne.s32.totalorder %s87, %s88
      %p99 = scmp.eq.s32.totalorder %s27, 0
      %p100 = por %p98, %p99
      %p101 = scmp.ne.s32.totalorder %s87, %s88
      %p102 = scmp.eq.s32.totalorder %s28, 1
      %p103 = por %p101, %p102
      %p105 = scmp.ne.s32.totalorder %s88, %s104
      %p106 = scmp.eq.s32.totalorder %s28, 0
      %p107 = por %p105, %p106
      %s108 = ssub.s32 %s22, %s29
      %p109 = scmp.eq.s32.totalorder %s108, 0
      %s111 = sadd.s32 %s110, 1
      %s112 = scalar_select %p109, %s110, %s111
      %p115 = pneg %p109
      %p116 = scmp.eq.s32.totalorder %s22, 1
      %p117 = por %p115, %p116
      %p118 = scmp.ne.s32.totalorder %s110, %s113
      %p119 = scmp.eq.s32.totalorder %s22, 0
      %p120 = por %p118, %p119
      %p121 = scmp.ne.s32.totalorder %s110, %s113
      %p122 = scmp.eq.s32.totalorder %s27, 1
      %p123 = por %p121, %p122
      %p124 = scmp.ne.s32.totalorder %s113, %s114
      %p125 = scmp.eq.s32.totalorder %s27, 0
      %p126 = por %p124, %p125
      %p127 = scmp.ne.s32.totalorder %s113, %s114
      %p128 = scmp.eq.s32.totalorder %s28, 1
      %p129 = por %p127, %p128
      %p131 = scmp.ne.s32.totalorder %s114, %s130
      %p132 = scmp.eq.s32.totalorder %s28, 0
      %p133 = por %p131, %p132
      %p134 = scmp.le.s32.totalorder 1, %s22
      %p135 = scmp.lt.s32.totalorder %s22, 3
      %p136 = pnand %p134, %p135
      %p137 = pneg %p136
      // Predicated region
      $region9: #{tpu_custom_call.1} parent=5 // pred_check
        _
      $region10: #{tpu_custom_call.1} parent=5 // pred_check_branch
        %139 = sbr.rel (%p136) target = $region12
      $region11: #{tpu_custom_call.1} parent=5 // pred_region
        %s140 = ssub.s32 %s22, 1
      $region12: #{tpu_custom_call.1} parent=5 // pred_fallthru
        _
      %p141 = scmp.lt.s32.totalorder %s22, 2
      // Predicated region
      $region13: #{tpu_custom_call.1} parent=5 // pred_check
        %p142 = pneg %p141
      $region14: #{tpu_custom_call.1} parent=5 // pred_check_branch
        %144 = sbr.rel (%p142) target = $region16
      $region15: #{tpu_custom_call.1} parent=5 // pred_region
        // Predicated region
        $region17: #{tpu_custom_call.1} parent=15 // pred_check
          %p145 = pneg %p42
        $region18: #{tpu_custom_call.1} parent=15 // pred_check_branch
          %147 = sbr.rel (%p145) target = $region20
        $region19: #{tpu_custom_call.1} parent=15 // pred_region
          %s148 = sand.u32 %s32, 1
          %s149 = scalar_lea.sflag [#allocation3], %s148
          %s150 = sand.u32 %s32, 1
          %s151 = smul.addr %s150, 8
          %s152 = scalar_lea.vmem [#allocation2], %s151
          %s154 = ssub.s32 128, 128
          %155 = vsyncadd %s149, %s154
          %s156 = smul.addr %s22, 128
          %s157 = scalar_lea.hbm %s0, %s156
          %s159 = sshll.u32 %s152, 4
          %s160 = int_to_ptr.vmem [resolvable:$true] %s159
          %162 = dma.hbm_to_vmem [thread:$0]  %s157, 128, %s160, %s149
        $region20: #{tpu_custom_call.1} parent=15 // pred_fallthru
          _
        // Predicated region
        $region21: #{tpu_custom_call.1} parent=15 // pred_check
          %p163 = pneg %p68
        $region22: #{tpu_custom_call.1} parent=15 // pred_check_branch
          %165 = sbr.rel (%p163) target = $region24
        $region23: #{tpu_custom_call.1} parent=15 // pred_region
          %s166 = sand.u32 %s58, 1
          %s167 = scalar_lea.sflag [#allocation6], %s166
          %s168 = sand.u32 %s58, 1
          %s169 = smul.addr %s168, 8
          %s170 = scalar_lea.vmem [#allocation5], %s169
          %s172 = ssub.s32 128, 128
          %173 = vsyncadd %s167, %s172
          %s174 = smul.addr %s22, 128
          %s175 = scalar_lea.hbm %s1, %s174
          %s177 = sshll.u32 %s170, 4
          %s178 = int_to_ptr.vmem [resolvable:$true] %s177
          %180 = dma.hbm_to_vmem [thread:$0]  %s175, 128, %s178, %s167
        $region24: #{tpu_custom_call.1} parent=15 // pred_fallthru
          _
      $region16: #{tpu_custom_call.1} parent=5 // pred_fallthru
        _
      %p181 = scmp.le.s32.totalorder 1, %s22
      %p182 = scmp.lt.s32.totalorder %s22, 3
      %p183 = pnand %p181, %p182
      %p184 = pneg %p183
      // Predicated region
      $region25: #{tpu_custom_call.1} parent=5 // pred_check
        _
      $region26: #{tpu_custom_call.1} parent=5 // pred_check_branch
        %186 = sbr.rel (%p183) target = $region28
      $region27: #{tpu_custom_call.1} parent=5 // pred_region
        %s187 = ssub.s32 %s22, 1
        %s188 = sand.u32 %s35, 1
        %s189 = scalar_lea.sflag [#allocation3], %s188
        %s190 = sand.u32 %s35, 1
        %s191 = smul.addr %s190, 8
        %s192 = scalar_lea.vmem [#allocation2], %s191
        // Predicated region
        $region29: #{tpu_custom_call.1} parent=27 // pred_check
          %p193 = pneg %p48
        $region30: #{tpu_custom_call.1} parent=27 // pred_check_branch
          %195 = sbr.rel (%p193) target = $region32
        $region31: #{tpu_custom_call.1} parent=27 // pred_region
          %196 = dma.done %s189, 128
        $region32: #{tpu_custom_call.1} parent=27 // pred_fallthru
          _
        %s197 = sand.u32 %s61, 1
        %s198 = scalar_lea.sflag [#allocation6], %s197
        %s199 = sand.u32 %s61, 1
        %s200 = smul.addr %s199, 8
        %s201 = scalar_lea.vmem [#allocation5], %s200
        // Predicated region
        $region33: #{tpu_custom_call.1} parent=27 // pred_check
          %p202 = pneg %p74
        $region34: #{tpu_custom_call.1} parent=27 // pred_check_branch
          %204 = sbr.rel (%p202) target = $region36
        $region35: #{tpu_custom_call.1} parent=27 // pred_region
          %205 = dma.done %s198, 128
        $region36: #{tpu_custom_call.1} parent=27 // pred_fallthru
          _
        %s206 = sand.u32 %s35, 1
        %s207 = scalar_lea.sflag [#allocation3], %s206
        %s208 = sand.u32 %s35, 1
        %s209 = smul.addr %s208, 8
        %s210 = scalar_lea.vmem [#allocation2], %s209
        %p211 = pneg %p48
        %p212 = pneg %p45
        %s213 = sand.u32 %s61, 1
        %s214 = scalar_lea.sflag [#allocation6], %s213
        %s215 = sand.u32 %s61, 1
        %s216 = smul.addr %s215, 8
        %s217 = scalar_lea.vmem [#allocation5], %s216
        %p218 = pneg %p74
        %p219 = pneg %p71
        %p220 = pneg %p100
        %p221 = pneg %p97
        %s222 = sand.u32 %s87, 1
        %s223 = scalar_lea.sflag [#allocation4], %s222
        %s224 = sand.u32 %s87, 1
        %s225 = smul.addr %s224, 8
        %s226 = scalar_lea.vmem [#allocation7], %s225
        %p227 = pneg %p126
        %p228 = pneg %p123
        %s229 = sand.u32 %s113, 1
        %s230 = scalar_lea.sflag [#allocation9], %s229
        %s231 = sand.u32 %s113, 1
        %s232 = smul.addr %s231, 8
        %s233 = scalar_lea.vmem [#allocation8], %s232
        %v234 = vld [vmem:[%s201] sm:$0xff]
        %v235 = vld [vmem:[%s192] sm:$0xff]
        %vm236 = vcmp.gt.f32.partialorder %v234, 0.0
        %v237 = vsub.f32 %v234, %v235
        %v238 = vand.u32 2147483647, %v237
        %vm239 = vcmp.le.f32.partialorder %v238, 1.0
        %v240 = vmul.f32 %v238, 2.0
        %v241 = vsub.f32 %v240, 1.0
        %v242 = vrsqrt.pop %v241
        %v243 = vmul.f32 %v241, %v242
        %vm244 = vcmp.eq.f32.partialorder %v241, inf
        %v245 = vsel %vm244, %v241, %v243
        %vm246 = vcmp.eq.f32.partialorder %v241, 0.0
        %v247 = vand.u32 %v241, 2147483648
        %v248 = vsel %vm246, %v247, %v245
        %v249 = vsel %vm239, %v238, %v248
        %v250 = vsel %vm236, %v249, 0.0
        %v251 = vsel %vm236, 1, 0
        %v252 = vcvt.s32.f32 %v251
        %v253 = vadd.f32 %v250, 0.0
        %v254 = vadd.f32 %v253, 0.0
        %v255 = vadd.f32 %v252, 0.0
        %v256 = vadd.f32 %v255, 0.0
        %257 = vst [vmem:[%s226] sm:$0xff] %v254
        %258 = vst [vmem:[%s233] sm:$0xff] %v256
        %s259 = sand.u32 %s87, 1
        %s260 = scalar_lea.sflag [#allocation4], %s259
        %s261 = sand.u32 %s87, 1
        %s262 = smul.addr %s261, 8
        %s263 = scalar_lea.vmem [#allocation7], %s262
        %s264 = sand.u32 %s113, 1
        %s265 = scalar_lea.sflag [#allocation9], %s264
        %s266 = sand.u32 %s113, 1
        %s267 = smul.addr %s266, 8
        %s268 = scalar_lea.vmem [#allocation8], %s267
        // Predicated region
        $region37: #{tpu_custom_call.1} parent=27 // pred_check
          %p269 = pneg %p97
        $region38: #{tpu_custom_call.1} parent=27 // pred_check_branch
          %271 = sbr.rel (%p269) target = $region40
        $region39: #{tpu_custom_call.1} parent=27 // pred_region
          %s273 = ssub.s32 128, 128
          %274 = vsyncadd %s260, %s273
          %s275 = smul.addr %s27, 128
          %s276 = scalar_lea.hbm %s2, %s275
          %s278 = sshll.u32 %s263, 4
          %s279 = int_to_ptr.vmem [resolvable:$true] %s278
          %281 = dma.vmem_to_hbm [thread:$0]  %s279, 128, %s276, %s260
        $region40: #{tpu_custom_call.1} parent=27 // pred_fallthru
          _
        // Predicated region
        $region41: #{tpu_custom_call.1} parent=27 // pred_check
          %p282 = pneg %p123
        $region42: #{tpu_custom_call.1} parent=27 // pred_check_branch
          %284 = sbr.rel (%p282) target = $region44
        $region43: #{tpu_custom_call.1} parent=27 // pred_region
          %s286 = ssub.s32 128, 128
          %287 = vsyncadd %s265, %s286
          %s288 = smul.addr %s27, 128
          %s289 = scalar_lea.hbm %s3, %s288
          %s291 = sshll.u32 %s268, 4
          %s292 = int_to_ptr.vmem [resolvable:$true] %s291
          %294 = dma.vmem_to_hbm [thread:$0]  %s292, 128, %s289, %s265
        $region44: #{tpu_custom_call.1} parent=27 // pred_fallthru
          _
      $region28: #{tpu_custom_call.1} parent=5 // pred_fallthru
        _
      %p295 = scmp.le.s32.totalorder 2, %s22
      // Predicated region
      $region45: #{tpu_custom_call.1} parent=5 // pred_check
        %p296 = pneg %p295
      $region46: #{tpu_custom_call.1} parent=5 // pred_check_branch
        %298 = sbr.rel (%p296) target = $region48
      $region47: #{tpu_custom_call.1} parent=5 // pred_region
        %s299 = ssub.s32 %s22, 2
        // Predicated region
        $region49: #{tpu_custom_call.1} parent=47 // pred_check
          %p300 = pneg %p103
        $region50: #{tpu_custom_call.1} parent=47 // pred_check_branch
          %302 = sbr.rel (%p300) target = $region52
        $region51: #{tpu_custom_call.1} parent=47 // pred_region
          %s303 = sand.u32 %s88, 1
          %s304 = scalar_lea.sflag [#allocation4], %s303
          %s305 = sand.u32 %s88, 1
          %s306 = smul.addr %s305, 8
          %s307 = scalar_lea.vmem [#allocation7], %s306
          %308 = dma.done %s304, 128
        $region52: #{tpu_custom_call.1} parent=47 // pred_fallthru
          _
        // Predicated region
        $region53: #{tpu_custom_call.1} parent=47 // pred_check
          %p309 = pneg %p129
        $region54: #{tpu_custom_call.1} parent=47 // pred_check_branch
          %311 = sbr.rel (%p309) target = $region56
        $region55: #{tpu_custom_call.1} parent=47 // pred_region
          %s312 = sand.u32 %s114, 1
          %s313 = scalar_lea.sflag [#allocation9], %s312
          %s314 = sand.u32 %s114, 1
          %s315 = smul.addr %s314, 8
          %s316 = scalar_lea.vmem [#allocation8], %s315
          %317 = dma.done %s313, 128
        $region56: #{tpu_custom_call.1} parent=47 // pred_fallthru
          _
      $region48: #{tpu_custom_call.1} parent=5 // pred_fallthru
        _
    $region6: #{tpu_custom_call.1} parent=1 // loop_footer
      %s26 = sadd.s32 1, %s22
    $region7: #{tpu_custom_call.1} parent=1 // loop_footer_branch
      %21 = sbr.rel target = $region3
    $region8: #{tpu_custom_call.1} parent=1 // loop_exit
      _
    %318 = vsyncpa [#allocation3], 1
    %s319 = scalar_lea.sflag [#allocation3], 1
    %320 = vsyncpa %s319, 1
    %321 = vsyncpa [#allocation6], 1
    %s322 = scalar_lea.sflag [#allocation6], 1
    %323 = vsyncpa %s322, 1
    %324 = vsyncpa [#allocation4], 1
    %s325 = scalar_lea.sflag [#allocation4], 1
    %326 = vsyncpa %s325, 1
    %327 = vsyncpa [#allocation9], 1
    %s328 = scalar_lea.sflag [#allocation9], 1
    %329 = vsyncpa %s328, 1

</llo_original>
